<compile_context>
chip_gen: v6e
topology: v6e:2x2x1
jax: 0.10.0
libtpu: 0.0.40
codegen_flags: <defaults>
</compile_context>

<pallas_src>
import math
import functools

import jax
import jax.numpy as jnp
import numpy as np
from jax.experimental import pallas as pl
from jax.experimental.pallas import tpu as pltpu

_LANE = 128


def _qkv_attn_kernel(qkv_ref, out_ref, *, ch, t_real, matmul_dtype):
    """qkv_ref: (Hblk, 3, ch, Tpad)   out_ref: (Hblk, ch, Tpad)."""
    # Fold both 1/ch**0.25 scales into a single factor applied to q only.
    scale2 = 1.0 / math.sqrt(ch)

    q = qkv_ref[:, 0, :, :] * scale2          # (H, ch, T)
    k = qkv_ref[:, 1, :, :]                   # (H, ch, T)
    v = qkv_ref[:, 2, :, :]                   # (H, ch, T)

    if matmul_dtype is not None:
        q = q.astype(matmul_dtype)
        k = k.astype(matmul_dtype)

    # w[h, t, s] = sum_c q[h, c, t] * k[h, c, s]   (batch h, contract c)
    w = jax.lax.dot_general(
        q, k,
        dimension_numbers=(((1,), (1,)), ((0,), (0,))),
        preferred_element_type=jnp.float32,
    )                                          # (H, Tq, Ts), f32

    t_pad = w.shape[-1]
    if t_real != t_pad:
        # Mask padded key positions (before any exp / downcast).
        key_idx = jax.lax.broadcasted_iota(jnp.int32, (1, 1, t_pad), 2)
        w = jnp.where(key_idx < t_real, w, jnp.float32(-1e30))

    # f32 softmax statistics over keys (matches torch .float() softmax), but
    # normalization is deferred until after the PV matmul.
    m = jnp.max(w, axis=-1, keepdims=True)     # (H, Tq, 1)
    e = jnp.exp(w - m)                         # (H, Tq, Ts) un-normalized
    s = jnp.sum(e, axis=-1)                    # (H, Tq)

    mm_dtype = matmul_dtype if matmul_dtype is not None else v.dtype
    e_mm = e.astype(mm_dtype)
    v_mm = v if v.dtype == mm_dtype else v.astype(mm_dtype)

    # a_un[h, c, t] = sum_s v[h, c, s] * e[h, t, s]   (batch h, contract s)
    a_un = jax.lax.dot_general(
        v_mm, e_mm,
        dimension_numbers=(((2,), (2,)), ((0,), (0,))),
        preferred_element_type=jnp.float32,
    )                                          # (H, ch, Tq), f32

    # One reciprocal per query row, broadcast over ch (a (ch, T)-sized multiply
    # instead of the former (T, T) one).  approx=False keeps f32 parity.
    inv = pl.reciprocal(s, approx=False)       # (H, Tq)
    out_ref[...] = (a_un * inv[:, None, :]).astype(out_ref.dtype)


def _vmem_budget_bytes():
    """~0.75x of this generation's per-core VMEM (safe fallback: 48 MiB)."""
    cap = 64 * 1024 * 1024
    try:
        info = pltpu.get_tpu_info()
        cap = int(getattr(info, "vmem_capacity_bytes", cap))
    except Exception:
        pass
    return int(cap * 0.75)


def _pick_head_block(B, ch, t_pad, itemsize, vmem_budget):
    """Largest divisor of B whose per-step VMEM footprint fits the budget,
    preferring an even grid-step count (v7x megacore friendliness)."""
    # ~3 live (Tpad, Tpad) f32 intermediates per head (scores, exp, temps).
    per_head_interm = 3 * t_pad * t_pad * 4
    # Double-buffered (3*ch + ch, Tpad) in/out blocks + f32 PV accumulator.
    per_head_io = 2 * 4 * ch * t_pad * itemsize + 2 * ch * t_pad * 4
    per_head = per_head_interm + per_head_io
    cap = max(1, int(vmem_budget) // per_head)

    divisors = [h for h in range(1, B + 1) if B % h == 0 and h <= cap]
    if not divisors:
        return 1
    best = max(divisors)
    # Even step count keeps both v7x TensorCores busy on the parallel axis;
    # only take it when it costs at most a 2x smaller head block (on v5e/v6e
    # the penalty is a single extra ~0.35us grid step).
    even = [h for h in divisors if (B // h) % 2 == 0]
    if even and 2 * max(even) >= best:
        return max(even)
    return best


def qkv_attention_legacy(qkv, n_heads, *, use_bf16_matmul=False):
    """qkv: (bs, 3*n_heads*ch, length) -> (bs, n_heads*ch, length)."""
    bs, width, length = qkv.shape
    assert width % (3 * n_heads) == 0
    ch = width // (3 * n_heads)
    B = bs * n_heads

    # Legacy layout: per head, [q(ch), k(ch), v(ch)] stacked along channels.
    # Split q/k/v at the wrapper (free XLA reshape) so in-kernel views are
    # whole (ch, T) slabs regardless of ch's sublane alignment.
    qkv_r = qkv.reshape(B, 3, ch, length)

    # Lane-dense sequence axis: pad T to a multiple of 128 (masked in-kernel).
    t_pad = pl.cdiv(length, _LANE) * _LANE
    if t_pad != length:
        qkv_r = jnp.pad(qkv_r, ((0, 0), (0, 0), (0, 0), (0, t_pad - length)))

    itemsize = jnp.dtype(qkv.dtype).itemsize
    vmem_budget = _vmem_budget_bytes()
    hblk = _pick_head_block(B, ch, t_pad, itemsize, vmem_budget)
    grid = (B // hblk,)

    kernel = functools.partial(
        _qkv_attn_kernel, ch=ch, t_real=length,
        matmul_dtype=jnp.bfloat16 if use_bf16_matmul else None)

    cost = pl.CostEstimate(
        flops=4 * B * t_pad * t_pad * ch,        # two matmuls, 2 flops/MAC
        transcendentals=B * t_pad * t_pad,       # exp
        bytes_accessed=4 * B * ch * t_pad * itemsize,
    )

    out = pl.pallas_call(
        kernel,
        out_shape=jax.ShapeDtypeStruct((B, ch, t_pad), qkv.dtype),
        grid_spec=pltpu.PrefetchScalarGridSpec(
            num_scalar_prefetch=0,
            grid=grid,
            in_specs=[pl.BlockSpec((hblk, 3, ch, t_pad),
                                   lambda b: (b, 0, 0, 0))],
            out_specs=pl.BlockSpec((hblk, ch, t_pad), lambda b: (b, 0, 0)),
        ),
        compiler_params=pltpu.CompilerParams(
            dimension_semantics=("parallel",),
            vmem_limit_bytes=int(vmem_budget),
        ),
        cost_estimate=cost,
    )(qkv_r)

    if t_pad != length:
        out = out[:, :, :length]
    return out.reshape(bs, n_heads * ch, length)


def qkv_attention_legacy_ref(qkv, n_heads):
    """Pure-JAX reference mirroring the PyTorch forward exactly."""
    bs, width, length = qkv.shape
    ch = width // (3 * n_heads)
    x = qkv.reshape(bs * n_heads, 3 * ch, length)
    q, k, v = x[:, :ch], x[:, ch:2 * ch], x[:, 2 * ch:]
    scale = 1.0 / math.sqrt(math.sqrt(ch))
    w = jnp.einsum('bct,bcs->bts', q * scale, k * scale)
    w = jax.nn.softmax(w.astype(jnp.float32), axis=-1).astype(w.dtype)
    a = jnp.einsum('bts,bcs->bct', w, v)
    return a.reshape(bs, -1, length)


if __name__ == "__main__":
    key = jax.random.PRNGKey(0)

    # Case 1: small shapes consistent with the module (bs=2, n_heads=2, ch=8,
    # length=16) -> exercises the pad-to-128 + key-mask path.
    bs, n_heads, ch, length = 2, 2, 8, 16
    width = 3 * n_heads * ch
    k1, k2 = jax.random.split(key)
    qkv = jax.random.normal(k1, (bs, width, length), dtype=jnp.float32)

    out = jax.block_until_ready(qkv_attention_legacy(qkv, n_heads))
    ref = qkv_attention_legacy_ref(qkv, n_heads)
    assert out.shape == (bs, n_heads * ch, length)
    np.testing.assert_allclose(np.asarray(out), np.asarray(ref),
                               rtol=1e-5, atol=1e-5)

    # Case 2: lane-aligned length (no padding path), like the default UNet
    # attention resolution (T would be 512 there; 128 keeps the test tiny).
    bs2, n_heads2, ch2, length2 = 1, 2, 8, 128
    qkv2 = jax.random.normal(k2, (bs2, 3 * n_heads2 * ch2, length2),
                             dtype=jnp.float32)
    out2 = jax.block_until_ready(qkv_attention_legacy(qkv2, n_heads2))
    ref2 = qkv_attention_legacy_ref(qkv2, n_heads2)
    np.testing.assert_allclose(np.asarray(out2), np.asarray(ref2),
                               rtol=1e-5, atol=1e-5)

    # Case 3: bf16-MXU fast path (f32 accumulation / softmax), loose tolerance.
    out3 = jax.block_until_ready(
        qkv_attention_legacy(qkv, n_heads, use_bf16_matmul=True))
    np.testing.assert_allclose(np.asarray(out3), np.asarray(ref),
                               rtol=5e-2, atol=5e-2)

    print("KERNEL_OK")
</pallas_src>

<mosaic_0001>
module attributes {stable_mosaic.version = 11 : i64} {
  func.func @_qkv_attn_kernel(%arg0: i32, %arg1: memref<2x3x8x128xf32, #tpu.memory_space<vmem>>, %arg2: memref<2x8x128xf32, #tpu.memory_space<vmem>>) attributes {dimension_semantics = [#tpu.dimension_semantics<parallel>], iteration_bounds = array<i64: 2>, scalar_prefetch = 0 : i64, scratch_operands = 0 : i64, tpu.core_type = #tpu.core_type<tc>, window_params = [{transform_indices = @transform_0, window_bounds = array<i64: 2, 3, 8, 128>}, {transform_indices = @transform_1, window_bounds = array<i64: 2, 8, 128>}]} {
    %c0 = arith.constant 0 : index
    %c0_0 = arith.constant 0 : index
    %c0_1 = arith.constant 0 : index
    %c0_2 = arith.constant 0 : index
    %0 = vector.load %arg1[%c0, %c0_0, %c0_1, %c0_2] : memref<2x3x8x128xf32, #tpu.memory_space<vmem>>, vector<2x1x8x128xf32>
    %1 = vector.shape_cast %0 : vector<2x1x8x128xf32> to vector<2x8x128xf32>
    %cst = arith.constant 0.353553385 : f32
    %2 = vector.broadcast %cst : f32 to vector<2x8x128xf32>
    %3 = arith.mulf %1, %2 : vector<2x8x128xf32>
    %c0_3 = arith.constant 0 : index
    %c1 = arith.constant 1 : index
    %c0_4 = arith.constant 0 : index
    %c0_5 = arith.constant 0 : index
    %4 = vector.load %arg1[%c0_3, %c1, %c0_4, %c0_5] : memref<2x3x8x128xf32, #tpu.memory_space<vmem>>, vector<2x1x8x128xf32>
    %5 = vector.shape_cast %4 : vector<2x1x8x128xf32> to vector<2x8x128xf32>
    %c0_6 = arith.constant 0 : index
    %c2 = arith.constant 2 : index
    %c0_7 = arith.constant 0 : index
    %c0_8 = arith.constant 0 : index
    %6 = vector.load %arg1[%c0_6, %c2, %c0_7, %c0_8] : memref<2x3x8x128xf32, #tpu.memory_space<vmem>>, vector<2x1x8x128xf32>
    %7 = vector.shape_cast %6 : vector<2x1x8x128xf32> to vector<2x8x128xf32>
    %cst_9 = arith.constant dense<0.000000e+00> : vector<2x128x128xf32>
    %8 = tpu.matmul %3, %5, %cst_9 {dimension_numbers = #tpu.dot_dimension_numbers<[1], [1], [2], [2], [0, 0, 0, 2, 1, 2], [0], [0]>} : vector<2x8x128xf32>, vector<2x8x128xf32>, vector<2x128x128xf32> -> vector<2x128x128xf32>
    %9 = tpu.iota {dimensions = array<i32: 2>} : vector<1x1x128xi32>
    %c16_i32 = arith.constant 16 : i32
    %10 = vector.broadcast %c16_i32 : i32 to vector<1x1x128xi32>
    %11 = arith.cmpi slt, %9, %10 : vector<1x1x128xi32>
    %cst_10 = arith.constant -1.000000e+30 : f32
    %12 = vector.shape_cast %11 : vector<1x1x128xi1> to vector<1x1x128xi1>
    %13 = vector.broadcast %12 : vector<1x1x128xi1> to vector<2x128x128xi1>
    %14 = vector.broadcast %cst_10 : f32 to vector<2x128x128xf32>
    %15 = arith.select %13, %8, %14 : vector<2x128x128xi1>, vector<2x128x128xf32>
    %cst_11 = arith.constant dense<0xFF800000> : vector<2x128xf32>
    %16 = vector.multi_reduction <maximumf>, %15, %cst_11 [2] : vector<2x128x128xf32> to vector<2x128xf32>
    %17 = vector.shape_cast %16 : vector<2x128xf32> to vector<2x128x1xf32>
    %18 = vector.broadcast %17 : vector<2x128x1xf32> to vector<2x128x128xf32>
    %19 = arith.subf %15, %18 : vector<2x128x128xf32>
    %20 = math.exp %19 : vector<2x128x128xf32>
    %cst_12 = arith.constant dense<0.000000e+00> : vector<2x128xf32>
    %21 = vector.multi_reduction <add>, %20, %cst_12 [2] : vector<2x128x128xf32> to vector<2x128xf32>
    %cst_13 = arith.constant dense<0.000000e+00> : vector<2x8x128xf32>
    %22 = tpu.matmul %7, %20, %cst_13 {dimension_numbers = #tpu.dot_dimension_numbers<[2], [2], [1], [1], [0, 0, 0, 1, 1, 1], [0], [0]>} : vector<2x8x128xf32>, vector<2x128x128xf32>, vector<2x8x128xf32> -> vector<2x8x128xf32>
    %23 = tpu.reciprocal %21 : vector<2x128xf32> -> vector<2x128xf32>
    %24 = vector.shape_cast %23 : vector<2x128xf32> to vector<2x1x128xf32>
    %25 = vector.broadcast %24 : vector<2x1x128xf32> to vector<2x8x128xf32>
    %26 = arith.mulf %22, %25 : vector<2x8x128xf32>
    %c0_14 = arith.constant 0 : index
    %c0_15 = arith.constant 0 : index
    %c0_16 = arith.constant 0 : index
    %27 = vector.load %arg2[%c0_14, %c0_15, %c0_16] : memref<2x8x128xf32, #tpu.memory_space<vmem>>, vector<2x8x128xf32>
    tpu.vector_store %arg2[%c0_14, %c0_15, %c0_16], %26 {strides = array<i32>} : memref<2x8x128xf32, #tpu.memory_space<vmem>>, vector<2x8x128xf32>,
    return
  }
  func.func @transform_0(%arg0: i32) -> (i32, i32, i32, i32) {
    %c0_i32 = arith.constant 0 : i32
    %c0_i32_0 = arith.constant 0 : i32
    %c0_i32_1 = arith.constant 0 : i32
    %c0_i32_2 = arith.constant 0 : i32
    return %arg0, %c0_i32, %c0_i32_0, %c0_i32_1 : i32, i32, i32, i32
  }
  func.func @transform_1(%arg0: i32) -> (i32, i32, i32) {
    %c0_i32 = arith.constant 0 : i32
    %c0_i32_0 = arith.constant 0 : i32
    %c0_i32_1 = arith.constant 0 : i32
    return %arg0, %c0_i32, %c0_i32_0 : i32, i32, i32
  }
}

</mosaic_0001>

<llo_original>
// kernel: tpu_custom_call.1
$region0: #{tpu_custom_call.1}
  #allocation0 [shape = 'u32[]', space=smem, size = 0x4, offset = 0x4, fixed_abs, tag = 'smem constant byte address 0x4 - core index']
  #allocation1 [shape = 'u32[144,128]{1,0:T(1,128)}', space=vmem, size = 0x12000, scoped, tag = 'internal scratch']
  %s0 = inlined_call_operand.hbm [shape: f32[4,3,8,128], index: 0, kind: input, shape index: {}]
  %s1 = inlined_call_operand.hbm [shape: f32[4,8,128], index: 1, kind: output, shape index: {}]
  %s2 = sld [smem:[#allocation0]]
  $region41: #{tpu_custom_call.1} parent=0
    _
  %s4 = ssub.s32 1, %s2
  %s5 = scalar_select 0, %s4, %s2
  $region1: #{tpu_custom_call.1} parent=0
    #allocation2 [shape = 'u8[49152]{0}', space=vmem, size = 0xc000, scoped, tag = 'input window, operand 0']
    #allocation3 [shape = 's32[2]{0}', space=sflag, size = 0x8, scoped, tag = 'scoped memory for tpu_custom_call.1']
    #allocation4 [shape = 's32[2]{0}', space=sflag, size = 0x8, scoped, tag = 'scoped memory for tpu_custom_call.1']
    #allocation5 [shape = 'u8[16384]{0}', space=vmem, size = 0x4000, scoped, tag = 'output window, operand 0']
    %6 = vsyncpa [#allocation3], 0
    %s7 = scalar_lea.sflag [#allocation3], 1
    %8 = vsyncpa %s7, 0
    %9 = vsyncpa [#allocation4], 0
    %s10 = scalar_lea.sflag [#allocation4], 1
    %11 = vsyncpa %s10, 0
    loop: start=0, step=1, limit=4
    $region2: #{tpu_custom_call.1} parent=1 // loop_pre_header
      _
    $region3: #{tpu_custom_call.1} parent=1 // loop_header
      %s13 = sphi 0, %s17
      %p14 = scmp.ge.s32.totalorder %s13, 4
      %s23 = sphi 0, %s25
      %s26 = sphi 0, %s23
      %s27 = sphi 0, %s26
      %s43 = sphi 0, %s27
      %s49 = sphi 0, %s51
      %s52 = sphi 0, %s49
      %s53 = sphi 0, %s52
      %s69 = sphi 0, %s53
    $region4: #{tpu_custom_call.1} parent=1 // loop_header_branch
      %16 = sbr.rel (%p14) target = $region8
    $region5: #{tpu_custom_call.1} parent=1 // loop_body
      %s18 = ssub.s32 %s13, 1
      %s19 = ssub.s32 %s13, 2
      %s20 = sadd.s32 %s13, 1
      %s21 = ssub.s32 %s13, %s20
      %p22 = scmp.eq.s32.totalorder %s21, 0
      %s24 = sadd.s32 %s23, 1
      %s25 = scalar_select %p22, %s23, %s24
      %p28 = pneg %p22
      %p29 = scmp.eq.s32.totalorder %s13, 1
      %p30 = por %p28, %p29
      %p31 = scmp.ne.s32.totalorder %s23, %s26
      %p32 = scmp.eq.s32.totalorder %s13, 0
      %p33 = por %p31, %p32
      %p34 = scmp.ne.s32.totalorder %s23, %s26
      %p35 = scmp.eq.s32.totalorder %s18, 1
      %p36 = por %p34, %p35
      %p37 = scmp.ne.s32.totalorder %s26, %s27
      %p38 = scmp.eq.s32.totalorder %s18, 0
      %p39 = por %p37, %p38
      %p40 = scmp.ne.s32.totalorder %s26, %s27
      %p41 = scmp.eq.s32.totalorder %s19, 1
      %p42 = por %p40, %p41
      %p44 = scmp.ne.s32.totalorder %s27, %s43
      %p45 = scmp.eq.s32.totalorder %s19, 0
      %p46 = por %p44, %p45
      %s47 = ssub.s32 %s13, %s20
      %p48 = scmp.eq.s32.totalorder %s47, 0
      %s50 = sadd.s32 %s49, 1
      %s51 = scalar_select %p48, %s49, %s50
      %p54 = pneg %p48
      %p55 = scmp.eq.s32.totalorder %s13, 1
      %p56 = por %p54, %p55
      %p57 = scmp.ne.s32.totalorder %s49, %s52
      %p58 = scmp.eq.s32.totalorder %s13, 0
      %p59 = por %p57, %p58
      %p60 = scmp.ne.s32.totalorder %s49, %s52
      %p61 = scmp.eq.s32.totalorder %s18, 1
      %p62 = por %p60, %p61
      %p63 = scmp.ne.s32.totalorder %s52, %s53
      %p64 = scmp.eq.s32.totalorder %s18, 0
      %p65 = por %p63, %p64
      %p66 = scmp.ne.s32.totalorder %s52, %s53
      %p67 = scmp.eq.s32.totalorder %s19, 1
      %p68 = por %p66, %p67
      %p70 = scmp.ne.s32.totalorder %s53, %s69
      %p71 = scmp.eq.s32.totalorder %s19, 0
      %p72 = por %p70, %p71
      %p73 = scmp.le.s32.totalorder 1, %s13
      %p74 = scmp.lt.s32.totalorder %s13, 3
      %p75 = pnand %p73, %p74
      %p76 = pneg %p75
      // Predicated region
      $region9: #{tpu_custom_call.1} parent=5 // pred_check
        _
      $region10: #{tpu_custom_call.1} parent=5 // pred_check_branch
        %78 = sbr.rel (%p75) target = $region12
      $region11: #{tpu_custom_call.1} parent=5 // pred_region
        %s79 = ssub.s32 %s13, 1
      $region12: #{tpu_custom_call.1} parent=5 // pred_fallthru
        _
      %p80 = scmp.lt.s32.totalorder %s13, 2
      // Predicated region
      $region13: #{tpu_custom_call.1} parent=5 // pred_check
        %p81 = pneg %p80
      $region14: #{tpu_custom_call.1} parent=5 // pred_check_branch
        %83 = sbr.rel (%p81) target = $region16
      $region15: #{tpu_custom_call.1} parent=5 // pred_region
        // Predicated region
        $region17: #{tpu_custom_call.1} parent=15 // pred_check
          %p84 = pneg %p33
        $region18: #{tpu_custom_call.1} parent=15 // pred_check_branch
          %86 = sbr.rel (%p84) target = $region20
        $region19: #{tpu_custom_call.1} parent=15 // pred_region
          %s87 = sand.u32 %s23, 1
          %s88 = scalar_lea.sflag [#allocation3], %s87
          %s89 = sand.u32 %s23, 1
          %s90 = smul.addr %s89, 48
          %s91 = scalar_lea.vmem [#allocation2], %s90
          %s92 = smul.u32 2, %s13
          %s94 = ssub.s32 768, 768
          %95 = vsyncadd %s88, %s94
          %s96 = smul.addr %s92, 3
          %s97 = smul.addr %s96, 128
          %s98 = scalar_lea.hbm %s0, %s97
          %s99 = sshll.u32 %s91, 4
          %s100 = int_to_ptr.vmem [resolvable:$true] %s99
          %105 = dma.hbm_to_vmem [thread:$0]  %s98, 768, %s100, %s88, 128, 128, 8
        $region20: #{tpu_custom_call.1} parent=15 // pred_fallthru
          _
      $region16: #{tpu_custom_call.1} parent=5 // pred_fallthru
        _
      %p106 = scmp.le.s32.totalorder 1, %s13
      %p107 = scmp.lt.s32.totalorder %s13, 3
      %p108 = pnand %p106, %p107
      %p109 = pneg %p108
      // Predicated region
      $region21: #{tpu_custom_call.1} parent=5 // pred_check
        _
      $region22: #{tpu_custom_call.1} parent=5 // pred_check_branch
        %111 = sbr.rel (%p108) target = $region24
      $region23: #{tpu_custom_call.1} parent=5 // pred_region
        %s112 = ssub.s32 %s13, 1
        %s113 = sand.u32 %s26, 1
        %s114 = scalar_lea.sflag [#allocation3], %s113
        %s115 = sand.u32 %s26, 1
        %s116 = smul.addr %s115, 48
        %s117 = scalar_lea.vmem [#allocation2], %s116
        // Predicated region
        $region25: #{tpu_custom_call.1} parent=23 // pred_check
          %p118 = pneg %p39
        $region26: #{tpu_custom_call.1} parent=23 // pred_check_branch
          %120 = sbr.rel (%p118) target = $region28
        $region27: #{tpu_custom_call.1} parent=23 // pred_region
          %121 = dma.done %s114, 768
        $region28: #{tpu_custom_call.1} parent=23 // pred_fallthru
          _
        %s122 = sand.u32 %s26, 1
        %s123 = scalar_lea.sflag [#allocation3], %s122
        %s124 = sand.u32 %s26, 1
        %s125 = smul.addr %s124, 48
        %s126 = scalar_lea.vmem [#allocation2], %s125
        %p127 = pneg %p39
        %p128 = pneg %p36
        %p129 = pneg %p65
        %p130 = pneg %p62
        %s131 = sand.u32 %s52, 1
        %s132 = scalar_lea.sflag [#allocation4], %s131
        %s133 = sand.u32 %s52, 1
        %s134 = smul.addr %s133, 16
        %s135 = scalar_lea.vmem [#allocation5], %s134
        %s136 = smul.u32 2, %s18
        %s137 = smul.u32 2, %s18
        %v138 = vld [vmem:[%s117] sm:$0xff]
        %v139 = vld [vmem:[%s117 + $0x18] sm:$0xff]
        %v140 = vmul.f32 %v138, 0.35355338
        %v141 = vmul.f32 %v139, 0.35355338
        %s142 = scalar_lea.vmem %s117, 8 [#allocation2]
        %v143 = vld [vmem:[%s142] sm:$0xff]
        %v144 = vld [vmem:[%s142 + $0x18] sm:$0xff]
        %s145 = scalar_lea.vmem %s117, 16 [#allocation2]
        %v146 = vld [vmem:[%s145] sm:$0xff]
        %v147 = vld [vmem:[%s145 + $0x18] sm:$0xff]
        %148 = vxpose.xlu0.b32.start [1/16] %v140, 128
        %149 = vxpose.xlu0.b32.cont [2/16] 0.0, 128
        %150 = vxpose.xlu0.b32.cont [3/16] 0.0, 128
        %151 = vxpose.xlu0.b32.cont [4/16] 0.0, 128
        %152 = vxpose.xlu0.b32.cont [5/16] 0.0, 128
        %153 = vxpose.xlu0.b32.cont [6/16] 0.0, 128
        %154 = vxpose.xlu0.b32.cont [7/16] 0.0, 128
        %155 = vxpose.xlu0.b32.cont [8/16] 0.0, 128
        %156 = vxpose.xlu0.b32.cont [9/16] 0.0, 128
        %157 = vxpose.xlu0.b32.cont [10/16] 0.0, 128
        %158 = vxpose.xlu0.b32.cont [11/16] 0.0, 128
        %159 = vxpose.xlu0.b32.cont [12/16] 0.0, 128
        %160 = vxpose.xlu0.b32.cont [13/16] 0.0, 128
        %161 = vxpose.xlu0.b32.cont [14/16] 0.0, 128
        %162 = vxpose.xlu0.b32.cont [15/16] 0.0, 128
        %163 = vxpose.xlu0.b32.end [16/16] 0.0, 128
        %v164 = vpop.trf.xlu0
        %v165 = vpop.trf.xlu0
        %v166 = vpop.trf.xlu0
        %v167 = vpop.trf.xlu0
        %v168 = vpop.trf.xlu0
        %v169 = vpop.trf.xlu0
        %v170 = vpop.trf.xlu0
        %v171 = vpop.trf.xlu0
        %v172 = vpop.trf.xlu0
        %v173 = vpop.trf.xlu0
        %v174 = vpop.trf.xlu0
        %v175 = vpop.trf.xlu0
        %v176 = vpop.trf.xlu0
        %v177 = vpop.trf.xlu0
        %v178 = vpop.trf.xlu0
        %v179 = vpop.trf.xlu0
        %vm180 = vcmask 64512
        %v182 = vsel %vm180, %v164, 0
        %v185 = vsel %vm180, %v165, 0
        %v188 = vsel %vm180, %v166, 0
        %v191 = vsel %vm180, %v167, 0
        %v194 = vsel %vm180, %v168, 0
        %v197 = vsel %vm180, %v169, 0
        %v200 = vsel %vm180, %v170, 0
        %v203 = vsel %vm180, %v171, 0
        %v206 = vsel %vm180, %v172, 0
        %v209 = vsel %vm180, %v173, 0
        %v212 = vsel %vm180, %v174, 0
        %v215 = vsel %vm180, %v175, 0
        %v218 = vsel %vm180, %v176, 0
        %v221 = vsel %vm180, %v177, 0
        %v224 = vsel %vm180, %v178, 0
        %v227 = vsel %vm180, %v179, 0
        %229 = vmatprep.subr.mxu0 0.0
        %230 = vmatpush1.msra.mxu0 0.0
        %231 = vmatprep.subr.mxu0 0.0
        %232 = vmatpush1.msra.mxu0 0.0
        %233 = vmatprep.subr.mxu0 0.0
        %234 = vmatpush1.msra.mxu0 0.0
        %235 = vmatprep.subr.mxu0 0.0
        %236 = vmatpush1.msra.mxu0 0.0
        %237 = vmatprep.subr.mxu0 0.0
        %238 = vmatpush1.msra.mxu0 0.0
        %239 = vmatprep.subr.mxu0 0.0
        %240 = vmatpush1.msra.mxu0 0.0
        %241 = vmatprep.subr.mxu0 0.0
        %242 = vmatpush1.msra.mxu0 0.0
        %243 = vmatprep.subr.mxu0 0.0
        %244 = vmatpush1.msra.mxu0 0.0
        %245 = vmatprep.subr.mxu0 0.0
        %246 = vmatpush1.msra.mxu0 0.0
        %247 = vmatprep.subr.mxu0 0.0
        %248 = vmatpush1.msra.mxu0 0.0
        %249 = vmatprep.subr.mxu0 0.0
        %250 = vmatpush1.msra.mxu0 0.0
        %251 = vmatprep.subr.mxu0 0.0
        %252 = vmatpush1.msra.mxu0 0.0
        %253 = vmatprep.subr.mxu0 0.0
        %254 = vmatpush1.msra.mxu0 0.0
        %255 = vmatprep.subr.mxu0 0.0
        %256 = vmatpush1.msra.mxu0 0.0
        %257 = vmatprep.subr.mxu0 0.0
        %258 = vmatpush1.msra.mxu0 0.0
        %259 = vmatprep.subr.mxu0 0.0
        %260 = vmatpush1.msra.mxu0 %v143
        %261 = vmatprep.subr.mxu0 0.0
        %262 = vmatpush2.msra.mxu0 0.0
        %263 = vmatprep.subr.mxu0 0.0
        %264 = vmatpush2.msra.mxu0 0.0
        %265 = vmatprep.subr.mxu0 0.0
        %266 = vmatpush2.msra.mxu0 0.0
        %267 = vmatprep.subr.mxu0 0.0
        %268 = vmatpush2.msra.mxu0 0.0
        %269 = vmatprep.subr.mxu0 0.0
        %270 = vmatpush2.msra.mxu0 0.0
        %271 = vmatprep.subr.mxu0 0.0
        %272 = vmatpush2.msra.mxu0 0.0
        %273 = vmatprep.subr.mxu0 0.0
        %274 = vmatpush2.msra.mxu0 0.0
        %275 = vmatprep.subr.mxu0 0.0
        %276 = vmatpush2.msra.mxu0 0.0
        %277 = vmatprep.subr.mxu0 0.0
        %278 = vmatpush2.msra.mxu0 0.0
        %279 = vmatprep.subr.mxu0 0.0
        %280 = vmatpush2.msra.mxu0 0.0
        %281 = vmatprep.subr.mxu0 0.0
        %282 = vmatpush2.msra.mxu0 0.0
        %283 = vmatprep.subr.mxu0 0.0
        %284 = vmatpush2.msra.mxu0 0.0
        %285 = vmatprep.subr.mxu0 0.0
        %286 = vmatpush2.msra.mxu0 0.0
        %287 = vmatprep.subr.mxu0 0.0
        %288 = vmatpush2.msra.mxu0 0.0
        %289 = vmatprep.subr.mxu0 0.0
        %290 = vmatpush2.msra.mxu0 0.0
        %291 = vmatprep.subr.mxu0 0.0
        %292 = vmatpush2.msra.mxu0 0.0
        %293 = vmatprep.mubr.f32.mxu0 0.0
        %294 = vmatmul.mubr.f32.gmra.mxu0 %v182
        %v295 = vpop.f32.mrf.mxu0
        %v296 = vadd.f32 0.0, %v295
        %v297 = vpop.f32.mrf.mxu0
        %298 = vmatprep.mubr.f32.mxu0 0.0
        %299 = vmatmul.mubr.f32.gmra.mxu0 %v185
        %v300 = vpop.f32.mrf.mxu0
        %v301 = vadd.f32 0.0, %v300
        %v302 = vpop.f32.mrf.mxu0
        %303 = vmatprep.mubr.f32.mxu0 0.0
        %304 = vmatmul.mubr.f32.gmra.mxu0 %v188
        %v305 = vpop.f32.mrf.mxu0
        %v306 = vadd.f32 0.0, %v305
        %v307 = vpop.f32.mrf.mxu0
        %308 = vmatprep.mubr.f32.mxu0 0.0
        %309 = vmatmul.mubr.f32.gmra.mxu0 %v191
        %v310 = vpop.f32.mrf.mxu0
        %v311 = vadd.f32 0.0, %v310
        %v312 = vpop.f32.mrf.mxu0
        %313 = vmatprep.mubr.f32.mxu0 0.0
        %314 = vmatmul.mubr.f32.gmra.mxu0 %v194
        %v315 = vpop.f32.mrf.mxu0
        %v316 = vadd.f32 0.0, %v315
        %v317 = vpop.f32.mrf.mxu0
        %318 = vmatprep.mubr.f32.mxu0 0.0
        %319 = vmatmul.mubr.f32.gmra.mxu0 %v197
        %v320 = vpop.f32.mrf.mxu0
        %v321 = vadd.f32 0.0, %v320
        %v322 = vpop.f32.mrf.mxu0
        %323 = vmatprep.mubr.f32.mxu0 0.0
        %324 = vmatmul.mubr.f32.gmra.mxu0 %v200
        %v325 = vpop.f32.mrf.mxu0
        %v326 = vadd.f32 0.0, %v325
        %v327 = vpop.f32.mrf.mxu0
        %328 = vmatprep.mubr.f32.mxu0 0.0
        %329 = vmatmul.mubr.f32.gmra.mxu0 %v203
        %v330 = vpop.f32.mrf.mxu0
        %v331 = vadd.f32 0.0, %v330
        %v332 = vpop.f32.mrf.mxu0
        %333 = vmatprep.mubr.f32.mxu0 0.0
        %334 = vmatmul.mubr.f32.gmra.mxu0 %v206
        %v335 = vpop.f32.mrf.mxu0
        %v336 = vadd.f32 0.0, %v335
        %v337 = vpop.f32.mrf.mxu0
        %338 = vmatprep.mubr.f32.mxu0 0.0
        %339 = vmatmul.mubr.f32.gmra.mxu0 %v209
        %v340 = vpop.f32.mrf.mxu0
        %v341 = vadd.f32 0.0, %v340
        %v342 = vpop.f32.mrf.mxu0
        %343 = vmatprep.mubr.f32.mxu0 0.0
        %344 = vmatmul.mubr.f32.gmra.mxu0 %v212
        %v345 = vpop.f32.mrf.mxu0
        %v346 = vadd.f32 0.0, %v345
        %v347 = vpop.f32.mrf.mxu0
        %348 = vmatprep.mubr.f32.mxu0 0.0
        %349 = vmatmul.mubr.f32.gmra.mxu0 %v215
        %v350 = vpop.f32.mrf.mxu0
        %v351 = vadd.f32 0.0, %v350
        %v352 = vpop.f32.mrf.mxu0
        %353 = vmatprep.mubr.f32.mxu0 0.0
        %354 = vmatmul.mubr.f32.gmra.mxu0 %v218
        %v355 = vpop.f32.mrf.mxu0
        %v356 = vadd.f32 0.0, %v355
        %v357 = vpop.f32.mrf.mxu0
        %358 = vmatprep.mubr.f32.mxu0 0.0
        %359 = vmatmul.mubr.f32.gmra.mxu0 %v221
        %v360 = vpop.f32.mrf.mxu0
        %v361 = vadd.f32 0.0, %v360
        %v362 = vpop.f32.mrf.mxu0
        %363 = vmatprep.mubr.f32.mxu0 0.0
        %364 = vmatmul.mubr.f32.gmra.mxu0 %v224
        %v365 = vpop.f32.mrf.mxu0
        %v366 = vadd.f32 0.0, %v365
        %v367 = vpop.f32.mrf.mxu0
        %368 = vmatprep.mubr.f32.mxu0 0.0
        %369 = vmatmul.mubr.f32.gmra.mxu0 %v227
        %v370 = vpop.f32.mrf.mxu0
        %v371 = vadd.f32 0.0, %v370
        %v372 = vpop.f32.mrf.mxu0
        %373 = vdwg.mxu0
        %374 = vxpose.xlu0.b32.start [1/16] %v141, 128
        %375 = vxpose.xlu0.b32.cont [2/16] 0.0, 128
        %376 = vxpose.xlu0.b32.cont [3/16] 0.0, 128
        %377 = vxpose.xlu0.b32.cont [4/16] 0.0, 128
        %378 = vxpose.xlu0.b32.cont [5/16] 0.0, 128
        %379 = vxpose.xlu0.b32.cont [6/16] 0.0, 128
        %380 = vxpose.xlu0.b32.cont [7/16] 0.0, 128
        %381 = vxpose.xlu0.b32.cont [8/16] 0.0, 128
        %382 = vxpose.xlu0.b32.cont [9/16] 0.0, 128
        %383 = vxpose.xlu0.b32.cont [10/16] 0.0, 128
        %384 = vxpose.xlu0.b32.cont [11/16] 0.0, 128
        %385 = vxpose.xlu0.b32.cont [12/16] 0.0, 128
        %386 = vxpose.xlu0.b32.cont [13/16] 0.0, 128
        %387 = vxpose.xlu0.b32.cont [14/16] 0.0, 128
        %388 = vxpose.xlu0.b32.cont [15/16] 0.0, 128
        %389 = vxpose.xlu0.b32.end [16/16] 0.0, 128
        %v390 = vpop.trf.xlu0
        %v391 = vpop.trf.xlu0
        %v392 = vpop.trf.xlu0
        %v393 = vpop.trf.xlu0
        %v394 = vpop.trf.xlu0
        %v395 = vpop.trf.xlu0
        %v396 = vpop.trf.xlu0
        %v397 = vpop.trf.xlu0
        %v398 = vpop.trf.xlu0
        %v399 = vpop.trf.xlu0
        %v400 = vpop.trf.xlu0
        %v401 = vpop.trf.xlu0
        %v402 = vpop.trf.xlu0
        %v403 = vpop.trf.xlu0
        %v404 = vpop.trf.xlu0
        %v405 = vpop.trf.xlu0
        %v407 = vsel %vm180, %v390, 0
        %v410 = vsel %vm180, %v391, 0
        %v413 = vsel %vm180, %v392, 0
        %v416 = vsel %vm180, %v393, 0
        %v419 = vsel %vm180, %v394, 0
        %v422 = vsel %vm180, %v395, 0
        %v425 = vsel %vm180, %v396, 0
        %v428 = vsel %vm180, %v397, 0
        %v431 = vsel %vm180, %v398, 0
        %v434 = vsel %vm180, %v399, 0
        %v437 = vsel %vm180, %v400, 0
        %v440 = vsel %vm180, %v401, 0
        %v443 = vsel %vm180, %v402, 0
        %v446 = vsel %vm180, %v403, 0
        %v449 = vsel %vm180, %v404, 0
        %v452 = vsel %vm180, %v405, 0
        %454 = vmatprep.subr.mxu0 0.0
        %455 = vmatpush1.msra.mxu0 0.0
        %456 = vmatprep.subr.mxu0 0.0
        %457 = vmatpush1.msra.mxu0 0.0
        %458 = vmatprep.subr.mxu0 0.0
        %459 = vmatpush1.msra.mxu0 0.0
        %460 = vmatprep.subr.mxu0 0.0
        %461 = vmatpush1.msra.mxu0 0.0
        %462 = vmatprep.subr.mxu0 0.0
        %463 = vmatpush1.msra.mxu0 0.0
        %464 = vmatprep.subr.mxu0 0.0
        %465 = vmatpush1.msra.mxu0 0.0
        %466 = vmatprep.subr.mxu0 0.0
        %467 = vmatpush1.msra.mxu0 0.0
        %468 = vmatprep.subr.mxu0 0.0
        %469 = vmatpush1.msra.mxu0 0.0
        %470 = vmatprep.subr.mxu0 0.0
        %471 = vmatpush1.msra.mxu0 0.0
        %472 = vmatprep.subr.mxu0 0.0
        %473 = vmatpush1.msra.mxu0 0.0
        %474 = vmatprep.subr.mxu0 0.0
        %475 = vmatpush1.msra.mxu0 0.0
        %476 = vmatprep.subr.mxu0 0.0
        %477 = vmatpush1.msra.mxu0 0.0
        %478 = vmatprep.subr.mxu0 0.0
        %479 = vmatpush1.msra.mxu0 0.0
        %480 = vmatprep.subr.mxu0 0.0
        %481 = vmatpush1.msra.mxu0 0.0
        %482 = vmatprep.subr.mxu0 0.0
        %483 = vmatpush1.msra.mxu0 0.0
        %484 = vmatprep.subr.mxu0 0.0
        %485 = vmatpush1.msra.mxu0 %v144
        %486 = vmatprep.subr.mxu0 0.0
        %487 = vmatpush2.msra.mxu0 0.0
        %488 = vmatprep.subr.mxu0 0.0
        %489 = vmatpush2.msra.mxu0 0.0
        %490 = vmatprep.subr.mxu0 0.0
        %491 = vmatpush2.msra.mxu0 0.0
        %492 = vmatprep.subr.mxu0 0.0
        %493 = vmatpush2.msra.mxu0 0.0
        %494 = vmatprep.subr.mxu0 0.0
        %495 = vmatpush2.msra.mxu0 0.0
        %496 = vmatprep.subr.mxu0 0.0
        %497 = vmatpush2.msra.mxu0 0.0
        %498 = vmatprep.subr.mxu0 0.0
        %499 = vmatpush2.msra.mxu0 0.0
        %500 = vmatprep.subr.mxu0 0.0
        %501 = vmatpush2.msra.mxu0 0.0
        %502 = vmatprep.subr.mxu0 0.0
        %503 = vmatpush2.msra.mxu0 0.0
        %504 = vmatprep.subr.mxu0 0.0
        %505 = vmatpush2.msra.mxu0 0.0
        %506 = vmatprep.subr.mxu0 0.0
        %507 = vmatpush2.msra.mxu0 0.0
        %508 = vmatprep.subr.mxu0 0.0
        %509 = vmatpush2.msra.mxu0 0.0
        %510 = vmatprep.subr.mxu0 0.0
        %511 = vmatpush2.msra.mxu0 0.0
        %512 = vmatprep.subr.mxu0 0.0
        %513 = vmatpush2.msra.mxu0 0.0
        %514 = vmatprep.subr.mxu0 0.0
        %515 = vmatpush2.msra.mxu0 0.0
        %516 = vmatprep.subr.mxu0 0.0
        %517 = vmatpush2.msra.mxu0 0.0
        %518 = vmatprep.mubr.f32.mxu0 0.0
        %519 = vmatmul.mubr.f32.gmra.mxu0 %v407
        %v520 = vpop.f32.mrf.mxu0
        %v521 = vadd.f32 0.0, %v520
        %v522 = vpop.f32.mrf.mxu0
        %523 = vmatprep.mubr.f32.mxu0 0.0
        %524 = vmatmul.mubr.f32.gmra.mxu0 %v410
        %v525 = vpop.f32.mrf.mxu0
        %v526 = vadd.f32 0.0, %v525
        %v527 = vpop.f32.mrf.mxu0
        %528 = vmatprep.mubr.f32.mxu0 0.0
        %529 = vmatmul.mubr.f32.gmra.mxu0 %v413
        %v530 = vpop.f32.mrf.mxu0
        %v531 = vadd.f32 0.0, %v530
        %v532 = vpop.f32.mrf.mxu0
        %533 = vmatprep.mubr.f32.mxu0 0.0
        %534 = vmatmul.mubr.f32.gmra.mxu0 %v416
        %v535 = vpop.f32.mrf.mxu0
        %v536 = vadd.f32 0.0, %v535
        %v537 = vpop.f32.mrf.mxu0
        %538 = vmatprep.mubr.f32.mxu0 0.0
        %539 = vmatmul.mubr.f32.gmra.mxu0 %v419
        %v540 = vpop.f32.mrf.mxu0
        %v541 = vadd.f32 0.0, %v540
        %v542 = vpop.f32.mrf.mxu0
        %543 = vmatprep.mubr.f32.mxu0 0.0
        %544 = vmatmul.mubr.f32.gmra.mxu0 %v422
        %v545 = vpop.f32.mrf.mxu0
        %v546 = vadd.f32 0.0, %v545
        %v547 = vpop.f32.mrf.mxu0
        %548 = vmatprep.mubr.f32.mxu0 0.0
        %549 = vmatmul.mubr.f32.gmra.mxu0 %v425
        %v550 = vpop.f32.mrf.mxu0
        %v551 = vadd.f32 0.0, %v550
        %v552 = vpop.f32.mrf.mxu0
        %553 = vmatprep.mubr.f32.mxu0 0.0
        %554 = vmatmul.mubr.f32.gmra.mxu0 %v428
        %v555 = vpop.f32.mrf.mxu0
        %v556 = vadd.f32 0.0, %v555
        %v557 = vpop.f32.mrf.mxu0
        %558 = vmatprep.mubr.f32.mxu0 0.0
        %559 = vmatmul.mubr.f32.gmra.mxu0 %v431
        %v560 = vpop.f32.mrf.mxu0
        %v561 = vadd.f32 0.0, %v560
        %v562 = vpop.f32.mrf.mxu0
        %563 = vmatprep.mubr.f32.mxu0 0.0
        %564 = vmatmul.mubr.f32.gmra.mxu0 %v434
        %v565 = vpop.f32.mrf.mxu0
        %v566 = vadd.f32 0.0, %v565
        %v567 = vpop.f32.mrf.mxu0
        %568 = vmatprep.mubr.f32.mxu0 0.0
        %569 = vmatmul.mubr.f32.gmra.mxu0 %v437
        %v570 = vpop.f32.mrf.mxu0
        %v571 = vadd.f32 0.0, %v570
        %v572 = vpop.f32.mrf.mxu0
        %573 = vmatprep.mubr.f32.mxu0 0.0
        %574 = vmatmul.mubr.f32.gmra.mxu0 %v440
        %v575 = vpop.f32.mrf.mxu0
        %v576 = vadd.f32 0.0, %v575
        %v577 = vpop.f32.mrf.mxu0
        %578 = vmatprep.mubr.f32.mxu0 0.0
        %579 = vmatmul.mubr.f32.gmra.mxu0 %v443
        %v580 = vpop.f32.mrf.mxu0
        %v581 = vadd.f32 0.0, %v580
        %v582 = vpop.f32.mrf.mxu0
        %583 = vmatprep.mubr.f32.mxu0 0.0
        %584 = vmatmul.mubr.f32.gmra.mxu0 %v446
        %v585 = vpop.f32.mrf.mxu0
        %v586 = vadd.f32 0.0, %v585
        %v587 = vpop.f32.mrf.mxu0
        %588 = vmatprep.mubr.f32.mxu0 0.0
        %589 = vmatmul.mubr.f32.gmra.mxu0 %v449
        %v590 = vpop.f32.mrf.mxu0
        %v591 = vadd.f32 0.0, %v590
        %v592 = vpop.f32.mrf.mxu0
        %593 = vmatprep.mubr.f32.mxu0 0.0
        %594 = vmatmul.mubr.f32.gmra.mxu0 %v452
        %v595 = vpop.f32.mrf.mxu0
        %v596 = vadd.f32 0.0, %v595
        %v597 = vpop.f32.mrf.mxu0
        %598 = vdwg.mxu0
        %v599 = vlaneseq
        %v600 = vand.u32 %v599, 127
        %vm601 = vcmp.lt.s32.totalorder %v600, 16
        %v602 = vsel %vm601, 1, 0
        %vm603 = vcmp.eq.s32.totalorder %v602, 1
        %v604 = vsel %vm603, %v296, -1e+30
        %v605 = vsel %vm603, %v301, -1e+30
        %v606 = vsel %vm603, %v306, -1e+30
        %v607 = vsel %vm603, %v311, -1e+30
        %v608 = vsel %vm603, %v316, -1e+30
        %v609 = vsel %vm603, %v321, -1e+30
        %v610 = vsel %vm603, %v326, -1e+30
        %v611 = vsel %vm603, %v331, -1e+30
        %v612 = vsel %vm603, %v336, -1e+30
        %v613 = vsel %vm603, %v341, -1e+30
        %v614 = vsel %vm603, %v346, -1e+30
        %v615 = vsel %vm603, %v351, -1e+30
        %v616 = vsel %vm603, %v356, -1e+30
        %v617 = vsel %vm603, %v361, -1e+30
        %v618 = vsel %vm603, %v366, -1e+30
        %v619 = vsel %vm603, %v371, -1e+30
        %v620 = vsel %vm603, %v521, -1e+30
        %v621 = vsel %vm603, %v526, -1e+30
        %v622 = vsel %vm603, %v531, -1e+30
        %v623 = vsel %vm603, %v536, -1e+30
        %v624 = vsel %vm603, %v541, -1e+30
        %v625 = vsel %vm603, %v546, -1e+30
        %v626 = vsel %vm603, %v551, -1e+30
        %v627 = vsel %vm603, %v556, -1e+30
        %v628 = vsel %vm603, %v561, -1e+30
        %v629 = vsel %vm603, %v566, -1e+30
        %v630 = vsel %vm603, %v571, -1e+30
        %v631 = vsel %vm603, %v576, -1e+30
        %v632 = vsel %vm603, %v581, -1e+30
        %v633 = vsel %vm603, %v586, -1e+30
        %v634 = vsel %vm603, %v591, -1e+30
        %v635 = vsel %vm603, %v596, -1e+30
        %636 = vmax.xlane.f32.xlu0 %v604
        %v637 = vpop.xlane.xlu0 %636
        %638 = vmax.xlane.f32.xlu0 %v605
        %v639 = vpop.xlane.xlu0 %638
        %640 = vmax.xlane.f32.xlu0 %v606
        %v641 = vpop.xlane.xlu0 %640
        %642 = vmax.xlane.f32.xlu0 %v607
        %v643 = vpop.xlane.xlu0 %642
        %644 = vmax.xlane.f32.xlu0 %v608
        %v645 = vpop.xlane.xlu0 %644
        %646 = vmax.xlane.f32.xlu0 %v609
        %v647 = vpop.xlane.xlu0 %646
        %648 = vmax.xlane.f32.xlu0 %v610
        %v649 = vpop.xlane.xlu0 %648
        %650 = vmax.xlane.f32.xlu0 %v611
        %v651 = vpop.xlane.xlu0 %650
        %652 = vmax.xlane.f32.xlu0 %v612
        %v653 = vpop.xlane.xlu0 %652
        %654 = vmax.xlane.f32.xlu0 %v613
        %v655 = vpop.xlane.xlu0 %654
        %656 = vmax.xlane.f32.xlu0 %v614
        %v657 = vpop.xlane.xlu0 %656
        %658 = vmax.xlane.f32.xlu0 %v615
        %v659 = vpop.xlane.xlu0 %658
        %660 = vmax.xlane.f32.xlu0 %v616
        %v661 = vpop.xlane.xlu0 %660
        %662 = vmax.xlane.f32.xlu0 %v617
        %v663 = vpop.xlane.xlu0 %662
        %664 = vmax.xlane.f32.xlu0 %v618
        %v665 = vpop.xlane.xlu0 %664
        %666 = vmax.xlane.f32.xlu0 %v619
        %v667 = vpop.xlane.xlu0 %666
        %668 = vmax.xlane.f32.xlu0 %v620
        %v669 = vpop.xlane.xlu0 %668
        %670 = vmax.xlane.f32.xlu0 %v621
        %v671 = vpop.xlane.xlu0 %670
        %672 = vmax.xlane.f32.xlu0 %v622
        %v673 = vpop.xlane.xlu0 %672
        %674 = vmax.xlane.f32.xlu0 %v623
        %v675 = vpop.xlane.xlu0 %674
        %676 = vmax.xlane.f32.xlu0 %v624
        %v677 = vpop.xlane.xlu0 %676
        %678 = vmax.xlane.f32.xlu0 %v625
        %v679 = vpop.xlane.xlu0 %678
        %680 = vmax.xlane.f32.xlu0 %v626
        %v681 = vpop.xlane.xlu0 %680
        %682 = vmax.xlane.f32.xlu0 %v627
        %v683 = vpop.xlane.xlu0 %682
        %684 = vmax.xlane.f32.xlu0 %v628
        %v685 = vpop.xlane.xlu0 %684
        %686 = vmax.xlane.f32.xlu0 %v629
        %v687 = vpop.xlane.xlu0 %686
        %688 = vmax.xlane.f32.xlu0 %v630
        %v689 = vpop.xlane.xlu0 %688
        %690 = vmax.xlane.f32.xlu0 %v631
        %v691 = vpop.xlane.xlu0 %690
        %692 = vmax.xlane.f32.xlu0 %v632
        %v693 = vpop.xlane.xlu0 %692
        %694 = vmax.xlane.f32.xlu0 %v633
        %v695 = vpop.xlane.xlu0 %694
        %696 = vmax.xlane.f32.xlu0 %v634
        %v697 = vpop.xlane.xlu0 %696
        %698 = vmax.xlane.f32.xlu0 %v635
        %v699 = vpop.xlane.xlu0 %698
        %v700 = vsub.f32 %v604, %v637
        %v701 = vsub.f32 %v605, %v639
        %v702 = vsub.f32 %v606, %v641
        %v703 = vsub.f32 %v607, %v643
        %v704 = vsub.f32 %v608, %v645
        %v705 = vsub.f32 %v609, %v647
        %v706 = vsub.f32 %v610, %v649
        %v707 = vsub.f32 %v611, %v651
        %v708 = vsub.f32 %v612, %v653
        %v709 = vsub.f32 %v613, %v655
        %v710 = vsub.f32 %v614, %v657
        %v711 = vsub.f32 %v615, %v659
        %v712 = vsub.f32 %v616, %v661
        %v713 = vsub.f32 %v617, %v663
        %v714 = vsub.f32 %v618, %v665
        %v715 = vsub.f32 %v619, %v667
        %v716 = vsub.f32 %v620, %v669
        %v717 = vsub.f32 %v621, %v671
        %v718 = vsub.f32 %v622, %v673
        %v719 = vsub.f32 %v623, %v675
        %v720 = vsub.f32 %v624, %v677
        %v721 = vsub.f32 %v625, %v679
        %v722 = vsub.f32 %v626, %v681
        %v723 = vsub.f32 %v627, %v683
        %v724 = vsub.f32 %v628, %v685
        %v725 = vsub.f32 %v629, %v687
        %v726 = vsub.f32 %v630, %v689
        %v727 = vsub.f32 %v631, %v691
        %v728 = vsub.f32 %v632, %v693
        %v729 = vsub.f32 %v633, %v695
        %v730 = vsub.f32 %v634, %v697
        %v731 = vsub.f32 %v635, %v699
        %v732 = vmul.f32 %v700, 1.442695
        %v733 = vpow.pop %v732
        %v734 = vmul.f32 %v701, 1.442695
        %v735 = vpow.pop %v734
        %v736 = vmul.f32 %v702, 1.442695
        %v737 = vpow.pop %v736
        %v738 = vmul.f32 %v703, 1.442695
        %v739 = vpow.pop %v738
        %v740 = vmul.f32 %v704, 1.442695
        %v741 = vpow.pop %v740
        %v742 = vmul.f32 %v705, 1.442695
        %v743 = vpow.pop %v742
        %v744 = vmul.f32 %v706, 1.442695
        %v745 = vpow.pop %v744
        %v746 = vmul.f32 %v707, 1.442695
        %v747 = vpow.pop %v746
        %v748 = vmul.f32 %v708, 1.442695
        %v749 = vpow.pop %v748
        %v750 = vmul.f32 %v709, 1.442695
        %v751 = vpow.pop %v750
        %v752 = vmul.f32 %v710, 1.442695
        %v753 = vpow.pop %v752
        %v754 = vmul.f32 %v711, 1.442695
        %v755 = vpow.pop %v754
        %v756 = vmul.f32 %v712, 1.442695
        %v757 = vpow.pop %v756
        %v758 = vmul.f32 %v713, 1.442695
        %v759 = vpow.pop %v758
        %v760 = vmul.f32 %v714, 1.442695
        %v761 = vpow.pop %v760
        %v762 = vmul.f32 %v715, 1.442695
        %v763 = vpow.pop %v762
        %v764 = vmul.f32 %v716, 1.442695
        %v765 = vpow.pop %v764
        %v766 = vmul.f32 %v717, 1.442695
        %v767 = vpow.pop %v766
        %v768 = vmul.f32 %v718, 1.442695
        %v769 = vpow.pop %v768
        %v770 = vmul.f32 %v719, 1.442695
        %v771 = vpow.pop %v770
        %v772 = vmul.f32 %v720, 1.442695
        %v773 = vpow.pop %v772
        %v774 = vmul.f32 %v721, 1.442695
        %v775 = vpow.pop %v774
        %v776 = vmul.f32 %v722, 1.442695
        %v777 = vpow.pop %v776
        %v778 = vmul.f32 %v723, 1.442695
        %v779 = vpow.pop %v778
        %v780 = vmul.f32 %v724, 1.442695
        %v781 = vpow.pop %v780
        %v782 = vmul.f32 %v725, 1.442695
        %v783 = vpow.pop %v782
        %v784 = vmul.f32 %v726, 1.442695
        %v785 = vpow.pop %v784
        %v786 = vmul.f32 %v727, 1.442695
        %v787 = vpow.pop %v786
        %v788 = vmul.f32 %v728, 1.442695
        %v789 = vpow.pop %v788
        %v790 = vmul.f32 %v729, 1.442695
        %v791 = vpow.pop %v790
        %v792 = vmul.f32 %v730, 1.442695
        %v793 = vpow.pop %v792
        %v794 = vmul.f32 %v731, 1.442695
        %v795 = vpow.pop %v794
        %796 = vadd.xlane.f32.xlu0 %v733
        %v797 = vpop.xlane.xlu0 %796
        %798 = vadd.xlane.f32.xlu0 %v735
        %v799 = vpop.xlane.xlu0 %798
        %800 = vadd.xlane.f32.xlu0 %v737
        %v801 = vpop.xlane.xlu0 %800
        %802 = vadd.xlane.f32.xlu0 %v739
        %v803 = vpop.xlane.xlu0 %802
        %804 = vadd.xlane.f32.xlu0 %v741
        %v805 = vpop.xlane.xlu0 %804
        %806 = vadd.xlane.f32.xlu0 %v743
        %v807 = vpop.xlane.xlu0 %806
        %808 = vadd.xlane.f32.xlu0 %v745
        %v809 = vpop.xlane.xlu0 %808
        %810 = vadd.xlane.f32.xlu0 %v747
        %v811 = vpop.xlane.xlu0 %810
        %812 = vadd.xlane.f32.xlu0 %v749
        %v813 = vpop.xlane.xlu0 %812
        %814 = vadd.xlane.f32.xlu0 %v751
        %v815 = vpop.xlane.xlu0 %814
        %816 = vadd.xlane.f32.xlu0 %v753
        %v817 = vpop.xlane.xlu0 %816
        %818 = vadd.xlane.f32.xlu0 %v755
        %v819 = vpop.xlane.xlu0 %818
        %820 = vadd.xlane.f32.xlu0 %v757
        %v821 = vpop.xlane.xlu0 %820
        %822 = vadd.xlane.f32.xlu0 %v759
        %v823 = vpop.xlane.xlu0 %822
        %824 = vadd.xlane.f32.xlu0 %v761
        %v825 = vpop.xlane.xlu0 %824
        %826 = vadd.xlane.f32.xlu0 %v763
        %v827 = vpop.xlane.xlu0 %826
        %828 = vadd.xlane.f32.xlu0 %v765
        %v829 = vpop.xlane.xlu0 %828
        %830 = vadd.xlane.f32.xlu0 %v767
        %v831 = vpop.xlane.xlu0 %830
        %832 = vadd.xlane.f32.xlu0 %v769
        %v833 = vpop.xlane.xlu0 %832
        %834 = vadd.xlane.f32.xlu0 %v771
        %v835 = vpop.xlane.xlu0 %834
        %836 = vadd.xlane.f32.xlu0 %v773
        %v837 = vpop.xlane.xlu0 %836
        %838 = vadd.xlane.f32.xlu0 %v775
        %v839 = vpop.xlane.xlu0 %838
        %840 = vadd.xlane.f32.xlu0 %v777
        %v841 = vpop.xlane.xlu0 %840
        %842 = vadd.xlane.f32.xlu0 %v779
        %v843 = vpop.xlane.xlu0 %842
        %844 = vadd.xlane.f32.xlu0 %v781
        %v845 = vpop.xlane.xlu0 %844
        %846 = vadd.xlane.f32.xlu0 %v783
        %v847 = vpop.xlane.xlu0 %846
        %848 = vadd.xlane.f32.xlu0 %v785
        %v849 = vpop.xlane.xlu0 %848
        %850 = vadd.xlane.f32.xlu0 %v787
        %v851 = vpop.xlane.xlu0 %850
        %852 = vadd.xlane.f32.xlu0 %v789
        %v853 = vpop.xlane.xlu0 %852
        %854 = vadd.xlane.f32.xlu0 %v791
        %v855 = vpop.xlane.xlu0 %854
        %856 = vadd.xlane.f32.xlu0 %v793
        %v857 = vpop.xlane.xlu0 %856
        %858 = vadd.xlane.f32.xlu0 %v795
        %v859 = vpop.xlane.xlu0 %858
        %860 = vmatprep.subr.mxu0 0.0
        %861 = vmatpush1.xpose.msra.mxu0 %v763
        %862 = vmatprep.subr.mxu0 0.0
        %863 = vmatpush1.xpose.msra.mxu0 %v761
        %864 = vmatprep.subr.mxu0 0.0
        %865 = vmatpush1.xpose.msra.mxu0 %v759
        %866 = vmatprep.subr.mxu0 0.0
        %867 = vmatpush1.xpose.msra.mxu0 %v757
        %868 = vmatprep.subr.mxu0 0.0
        %869 = vmatpush1.xpose.msra.mxu0 %v755
        %870 = vmatprep.subr.mxu0 0.0
        %871 = vmatpush1.xpose.msra.mxu0 %v753
        %872 = vmatprep.subr.mxu0 0.0
        %873 = vmatpush1.xpose.msra.mxu0 %v751
        %874 = vmatprep.subr.mxu0 0.0
        %875 = vmatpush1.xpose.msra.mxu0 %v749
        %876 = vmatprep.subr.mxu0 0.0
        %877 = vmatpush1.xpose.msra.mxu0 %v747
        %878 = vmatprep.subr.mxu0 0.0
        %879 = vmatpush1.xpose.msra.mxu0 %v745
        %880 = vmatprep.subr.mxu0 0.0
        %881 = vmatpush1.xpose.msra.mxu0 %v743
        %882 = vmatprep.subr.mxu0 0.0
        %883 = vmatpush1.xpose.msra.mxu0 %v741
        %884 = vmatprep.subr.mxu0 0.0
        %885 = vmatpush1.xpose.msra.mxu0 %v739
        %886 = vmatprep.subr.mxu0 0.0
        %887 = vmatpush1.xpose.msra.mxu0 %v737
        %888 = vmatprep.subr.mxu0 0.0
        %889 = vmatpush1.xpose.msra.mxu0 %v735
        %890 = vmatprep.subr.mxu0 0.0
        %891 = vmatpush1.xpose.msra.mxu0 %v733
        %892 = vmatprep.subr.mxu0 0.0
        %893 = vmatpush2.xpose.msra.mxu0 0.0
        %894 = vmatprep.subr.mxu0 0.0
        %895 = vmatpush2.xpose.msra.mxu0 0.0
        %896 = vmatprep.subr.mxu0 0.0
        %897 = vmatpush2.xpose.msra.mxu0 0.0
        %898 = vmatprep.subr.mxu0 0.0
        %899 = vmatpush2.xpose.msra.mxu0 0.0
        %900 = vmatprep.subr.mxu0 0.0
        %901 = vmatpush2.xpose.msra.mxu0 0.0
        %902 = vmatprep.subr.mxu0 0.0
        %903 = vmatpush2.xpose.msra.mxu0 0.0
        %904 = vmatprep.subr.mxu0 0.0
        %905 = vmatpush2.xpose.msra.mxu0 0.0
        %906 = vmatprep.subr.mxu0 0.0
        %907 = vmatpush2.xpose.msra.mxu0 0.0
        %908 = vmatprep.subr.mxu0 0.0
        %909 = vmatpush2.xpose.msra.mxu0 0.0
        %910 = vmatprep.subr.mxu0 0.0
        %911 = vmatpush2.xpose.msra.mxu0 0.0
        %912 = vmatprep.subr.mxu0 0.0
        %913 = vmatpush2.xpose.msra.mxu0 0.0
        %914 = vmatprep.subr.mxu0 0.0
        %915 = vmatpush2.xpose.msra.mxu0 0.0
        %916 = vmatprep.subr.mxu0 0.0
        %917 = vmatpush2.xpose.msra.mxu0 0.0
        %918 = vmatprep.subr.mxu0 0.0
        %919 = vmatpush2.xpose.msra.mxu0 0.0
        %920 = vmatprep.subr.mxu0 0.0
        %921 = vmatpush2.xpose.msra.mxu0 0.0
        %922 = vmatprep.subr.mxu0 0.0
        %923 = vmatpush2.xpose.msra.mxu0 0.0
        %924 = vmatprep.mubr.f32.mxu0 0.0
        %925 = vmatmul.mubr.f32.gmra.mxu0 %v146
        %v926 = vpop.f32.mrf.mxu0
        %v927 = vadd.f32 0.0, %v926
        %v928 = vpop.f32.mrf.mxu0
        %929 = vdwg.mxu0
        %930 = vmatprep.subr.mxu0 0.0
        %931 = vmatpush1.xpose.msra.mxu0 %v795
        %932 = vmatprep.subr.mxu0 0.0
        %933 = vmatpush1.xpose.msra.mxu0 %v793
        %934 = vmatprep.subr.mxu0 0.0
        %935 = vmatpush1.xpose.msra.mxu0 %v791
        %936 = vmatprep.subr.mxu0 0.0
        %937 = vmatpush1.xpose.msra.mxu0 %v789
        %938 = vmatprep.subr.mxu0 0.0
        %939 = vmatpush1.xpose.msra.mxu0 %v787
        %940 = vmatprep.subr.mxu0 0.0
        %941 = vmatpush1.xpose.msra.mxu0 %v785
        %942 = vmatprep.subr.mxu0 0.0
        %943 = vmatpush1.xpose.msra.mxu0 %v783
        %944 = vmatprep.subr.mxu0 0.0
        %945 = vmatpush1.xpose.msra.mxu0 %v781
        %946 = vmatprep.subr.mxu0 0.0
        %947 = vmatpush1.xpose.msra.mxu0 %v779
        %948 = vmatprep.subr.mxu0 0.0
        %949 = vmatpush1.xpose.msra.mxu0 %v777
        %950 = vmatprep.subr.mxu0 0.0
        %951 = vmatpush1.xpose.msra.mxu0 %v775
        %952 = vmatprep.subr.mxu0 0.0
        %953 = vmatpush1.xpose.msra.mxu0 %v773
        %954 = vmatprep.subr.mxu0 0.0
        %955 = vmatpush1.xpose.msra.mxu0 %v771
        %956 = vmatprep.subr.mxu0 0.0
        %957 = vmatpush1.xpose.msra.mxu0 %v769
        %958 = vmatprep.subr.mxu0 0.0
        %959 = vmatpush1.xpose.msra.mxu0 %v767
        %960 = vmatprep.subr.mxu0 0.0
        %961 = vmatpush1.xpose.msra.mxu0 %v765
        %962 = vmatprep.subr.mxu0 0.0
        %963 = vmatpush2.xpose.msra.mxu0 0.0
        %964 = vmatprep.subr.mxu0 0.0
        %965 = vmatpush2.xpose.msra.mxu0 0.0
        %966 = vmatprep.subr.mxu0 0.0
        %967 = vmatpush2.xpose.msra.mxu0 0.0
        %968 = vmatprep.subr.mxu0 0.0
        %969 = vmatpush2.xpose.msra.mxu0 0.0
        %970 = vmatprep.subr.mxu0 0.0
        %971 = vmatpush2.xpose.msra.mxu0 0.0
        %972 = vmatprep.subr.mxu0 0.0
        %973 = vmatpush2.xpose.msra.mxu0 0.0
        %974 = vmatprep.subr.mxu0 0.0
        %975 = vmatpush2.xpose.msra.mxu0 0.0
        %976 = vmatprep.subr.mxu0 0.0
        %977 = vmatpush2.xpose.msra.mxu0 0.0
        %978 = vmatprep.subr.mxu0 0.0
        %979 = vmatpush2.xpose.msra.mxu0 0.0
        %980 = vmatprep.subr.mxu0 0.0
        %981 = vmatpush2.xpose.msra.mxu0 0.0
        %982 = vmatprep.subr.mxu0 0.0
        %983 = vmatpush2.xpose.msra.mxu0 0.0
        %984 = vmatprep.subr.mxu0 0.0
        %985 = vmatpush2.xpose.msra.mxu0 0.0
        %986 = vmatprep.subr.mxu0 0.0
        %987 = vmatpush2.xpose.msra.mxu0 0.0
        %988 = vmatprep.subr.mxu0 0.0
        %989 = vmatpush2.xpose.msra.mxu0 0.0
        %990 = vmatprep.subr.mxu0 0.0
        %991 = vmatpush2.xpose.msra.mxu0 0.0
        %992 = vmatprep.subr.mxu0 0.0
        %993 = vmatpush2.xpose.msra.mxu0 0.0
        %994 = vmatprep.mubr.f32.mxu0 0.0
        %995 = vmatmul.mubr.f32.gmra.mxu0 %v147
        %v996 = vpop.f32.mrf.mxu0
        %v997 = vadd.f32 0.0, %v996
        %v998 = vpop.f32.mrf.mxu0
        %999 = vdwg.mxu0
        %v1000 = vrcp.pop %v797
        %v1001 = vrcp.pop %v799
        %v1002 = vrcp.pop %v801
        %v1003 = vrcp.pop %v803
        %v1004 = vrcp.pop %v805
        %v1005 = vrcp.pop %v807
        %v1006 = vrcp.pop %v809
        %v1007 = vrcp.pop %v811
        %v1008 = vrcp.pop %v813
        %v1009 = vrcp.pop %v815
        %v1010 = vrcp.pop %v817
        %v1011 = vrcp.pop %v819
        %v1012 = vrcp.pop %v821
        %v1013 = vrcp.pop %v823
        %v1014 = vrcp.pop %v825
        %v1015 = vrcp.pop %v827
        %v1016 = vrcp.pop %v829
        %v1017 = vrcp.pop %v831
        %v1018 = vrcp.pop %v833
        %v1019 = vrcp.pop %v835
        %v1020 = vrcp.pop %v837
        %v1021 = vrcp.pop %v839
        %v1022 = vrcp.pop %v841
        %v1023 = vrcp.pop %v843
        %v1024 = vrcp.pop %v845
        %v1025 = vrcp.pop %v847
        %v1026 = vrcp.pop %v849
        %v1027 = vrcp.pop %v851
        %v1028 = vrcp.pop %v853
        %v1029 = vrcp.pop %v855
        %v1030 = vrcp.pop %v857
        %v1031 = vrcp.pop %v859
        %v1064 = vlaneseq
        %v1065 = vshrl.u32 %v1064, 7
        %v1066 = vsub.s32 %v600, %v1065
        %v1067 = vrot.slane %v1000, %v1066
        %v1068 = vadd.s32 %v600, 4294967288
        %v1069 = vlaneseq
        %v1070 = vshrl.u32 %v1069, 7
        %v1071 = vsub.s32 %v1068, %v1070
        %v1072 = vrot.slane %v1001, %v1071
        %vm1073 = vcmask 130112
        %v1074 = vsel %vm1073, %v1072, %v1067
        %v1075 = vadd.s32 %v600, 4294967280
        %v1076 = vlaneseq
        %v1077 = vshrl.u32 %v1076, 7
        %v1078 = vsub.s32 %v1075, %v1077
        %v1079 = vrot.slane %v1002, %v1078
        %vm1080 = vcmask 195712
        %v1081 = vsel %vm1080, %v1079, %v1074
        %v1082 = vadd.s32 %v600, 4294967272
        %v1083 = vlaneseq
        %v1084 = vshrl.u32 %v1083, 7
        %v1085 = vsub.s32 %v1082, %v1084
        %v1086 = vrot.slane %v1003, %v1085
        %vm1087 = vcmask 261312
        %v1088 = vsel %vm1087, %v1086, %v1081
        %v1089 = vadd.s32 %v600, 4294967264
        %v1090 = vlaneseq
        %v1091 = vshrl.u32 %v1090, 7
        %v1092 = vsub.s32 %v1089, %v1091
        %v1093 = vrot.slane %v1004, %v1092
        %vm1094 = vcmask 326912
        %v1095 = vsel %vm1094, %v1093, %v1088
        %v1096 = vadd.s32 %v600, 4294967256
        %v1097 = vlaneseq
        %v1098 = vshrl.u32 %v1097, 7
        %v1099 = vsub.s32 %v1096, %v1098
        %v1100 = vrot.slane %v1005, %v1099
        %vm1101 = vcmask 392512
        %v1102 = vsel %vm1101, %v1100, %v1095
        %v1103 = vadd.s32 %v600, 4294967248
        %v1104 = vlaneseq
        %v1105 = vshrl.u32 %v1104, 7
        %v1106 = vsub.s32 %v1103, %v1105
        %v1107 = vrot.slane %v1006, %v1106
        %vm1108 = vcmask 458112
        %v1109 = vsel %vm1108, %v1107, %v1102
        %v1110 = vadd.s32 %v600, 4294967240
        %v1111 = vlaneseq
        %v1112 = vshrl.u32 %v1111, 7
        %v1113 = vsub.s32 %v1110, %v1112
        %v1114 = vrot.slane %v1007, %v1113
        %vm1115 = vcmask 523712
        %v1116 = vsel %vm1115, %v1114, %v1109
        %v1117 = vadd.s32 %v600, 4294967232
        %v1118 = vlaneseq
        %v1119 = vshrl.u32 %v1118, 7
        %v1120 = vsub.s32 %v1117, %v1119
        %v1121 = vrot.slane %v1008, %v1120
        %vm1122 = vcmask 589312
        %v1123 = vsel %vm1122, %v1121, %v1116
        %v1124 = vadd.s32 %v600, 4294967224
        %v1125 = vlaneseq
        %v1126 = vshrl.u32 %v1125, 7
        %v1127 = vsub.s32 %v1124, %v1126
        %v1128 = vrot.slane %v1009, %v1127
        %vm1129 = vcmask 654912
        %v1130 = vsel %vm1129, %v1128, %v1123
        %v1131 = vadd.s32 %v600, 4294967216
        %v1132 = vlaneseq
        %v1133 = vshrl.u32 %v1132, 7
        %v1134 = vsub.s32 %v1131, %v1133
        %v1135 = vrot.slane %v1010, %v1134
        %vm1136 = vcmask 720512
        %v1137 = vsel %vm1136, %v1135, %v1130
        %v1138 = vadd.s32 %v600, 4294967208
        %v1139 = vlaneseq
        %v1140 = vshrl.u32 %v1139, 7
        %v1141 = vsub.s32 %v1138, %v1140
        %v1142 = vrot.slane %v1011, %v1141
        %vm1143 = vcmask 786112
        %v1144 = vsel %vm1143, %v1142, %v1137
        %v1145 = vadd.s32 %v600, 4294967200
        %v1146 = vlaneseq
        %v1147 = vshrl.u32 %v1146, 7
        %v1148 = vsub.s32 %v1145, %v1147
        %v1149 = vrot.slane %v1012, %v1148
        %vm1150 = vcmask 851712
        %v1151 = vsel %vm1150, %v1149, %v1144
        %v1152 = vadd.s32 %v600, 4294967192
        %v1153 = vlaneseq
        %v1154 = vshrl.u32 %v1153, 7
        %v1155 = vsub.s32 %v1152, %v1154
        %v1156 = vrot.slane %v1013, %v1155
        %vm1157 = vcmask 917312
        %v1158 = vsel %vm1157, %v1156, %v1151
        %v1159 = vadd.s32 %v600, 4294967184
        %v1160 = vlaneseq
        %v1161 = vshrl.u32 %v1160, 7
        %v1162 = vsub.s32 %v1159, %v1161
        %v1163 = vrot.slane %v1014, %v1162
        %vm1164 = vcmask 982912
        %v1165 = vsel %vm1164, %v1163, %v1158
        %v1166 = vadd.s32 %v600, 4294967176
        %v1167 = vlaneseq
        %v1168 = vshrl.u32 %v1167, 7
        %v1169 = vsub.s32 %v1166, %v1168
        %v1170 = vrot.slane %v1015, %v1169
        %vm1171 = vcmask 1048512
        %v1172 = vsel %vm1171, %v1170, %v1165
        %v1173 = vlaneseq
        %v1174 = vshrl.u32 %v1173, 7
        %v1175 = vsub.s32 %v600, %v1174
        %v1176 = vrot.slane %v1016, %v1175
        %v1177 = vlaneseq
        %v1178 = vshrl.u32 %v1177, 7
        %v1179 = vsub.s32 %v1068, %v1178
        %v1180 = vrot.slane %v1017, %v1179
        %v1181 = vsel %vm1073, %v1180, %v1176
        %v1182 = vlaneseq
        %v1183 = vshrl.u32 %v1182, 7
        %v1184 = vsub.s32 %v1075, %v1183
        %v1185 = vrot.slane %v1018, %v1184
        %v1186 = vsel %vm1080, %v1185, %v1181
        %v1187 = vlaneseq
        %v1188 = vshrl.u32 %v1187, 7
        %v1189 = vsub.s32 %v1082, %v1188
        %v1190 = vrot.slane %v1019, %v1189
        %v1191 = vsel %vm1087, %v1190, %v1186
        %v1192 = vlaneseq
        %v1193 = vshrl.u32 %v1192, 7
        %v1194 = vsub.s32 %v1089, %v1193
        %v1195 = vrot.slane %v1020, %v1194
        %v1196 = vsel %vm1094, %v1195, %v1191
        %v1197 = vlaneseq
        %v1198 = vshrl.u32 %v1197, 7
        %v1199 = vsub.s32 %v1096, %v1198
        %v1200 = vrot.slane %v1021, %v1199
        %v1201 = vsel %vm1101, %v1200, %v1196
        %v1202 = vlaneseq
        %v1203 = vshrl.u32 %v1202, 7
        %v1204 = vsub.s32 %v1103, %v1203
        %v1205 = vrot.slane %v1022, %v1204
        %v1206 = vsel %vm1108, %v1205, %v1201
        %v1207 = vlaneseq
        %v1208 = vshrl.u32 %v1207, 7
        %v1209 = vsub.s32 %v1110, %v1208
        %v1210 = vrot.slane %v1023, %v1209
        %v1211 = vsel %vm1115, %v1210, %v1206
        %v1212 = vlaneseq
        %v1213 = vshrl.u32 %v1212, 7
        %v1214 = vsub.s32 %v1117, %v1213
        %v1215 = vrot.slane %v1024, %v1214
        %v1216 = vsel %vm1122, %v1215, %v1211
        %v1217 = vlaneseq
        %v1218 = vshrl.u32 %v1217, 7
        %v1219 = vsub.s32 %v1124, %v1218
        %v1220 = vrot.slane %v1025, %v1219
        %v1221 = vsel %vm1129, %v1220, %v1216
        %v1222 = vlaneseq
        %v1223 = vshrl.u32 %v1222, 7
        %v1224 = vsub.s32 %v1131, %v1223
        %v1225 = vrot.slane %v1026, %v1224
        %v1226 = vsel %vm1136, %v1225, %v1221
        %v1227 = vlaneseq
        %v1228 = vshrl.u32 %v1227, 7
        %v1229 = vsub.s32 %v1138, %v1228
        %v1230 = vrot.slane %v1027, %v1229
        %v1231 = vsel %vm1143, %v1230, %v1226
        %v1232 = vlaneseq
        %v1233 = vshrl.u32 %v1232, 7
        %v1234 = vsub.s32 %v1145, %v1233
        %v1235 = vrot.slane %v1028, %v1234
        %v1236 = vsel %vm1150, %v1235, %v1231
        %v1237 = vlaneseq
        %v1238 = vshrl.u32 %v1237, 7
        %v1239 = vsub.s32 %v1152, %v1238
        %v1240 = vrot.slane %v1029, %v1239
        %v1241 = vsel %vm1157, %v1240, %v1236
        %v1242 = vlaneseq
        %v1243 = vshrl.u32 %v1242, 7
        %v1244 = vsub.s32 %v1159, %v1243
        %v1245 = vrot.slane %v1030, %v1244
        %v1246 = vsel %vm1164, %v1245, %v1241
        %v1247 = vlaneseq
        %v1248 = vshrl.u32 %v1247, 7
        %v1249 = vsub.s32 %v1166, %v1248
        %v1250 = vrot.slane %v1031, %v1249
        %v1251 = vsel %vm1171, %v1250, %v1246
        %vm1252 = vcmask 1042434
        %v1253 = vsel %vm1252, %v1172, %v1172
        %vm1254 = vcmask 1043459
        %v1255 = vsel %vm1254, %v1172, %v1253
        %vm1256 = vcmask 1044484
        %v1257 = vsel %vm1256, %v1172, %v1255
        %vm1258 = vcmask 1045509
        %v1259 = vsel %vm1258, %v1172, %v1257
        %vm1260 = vcmask 1046534
        %v1261 = vsel %vm1260, %v1172, %v1259
        %vm1262 = vcmask 1047559
        %v1263 = vsel %vm1262, %v1172, %v1261
        %v1264 = vsel %vm1252, %v1251, %v1251
        %v1265 = vsel %vm1254, %v1251, %v1264
        %v1266 = vsel %vm1256, %v1251, %v1265
        %v1267 = vsel %vm1258, %v1251, %v1266
        %v1268 = vsel %vm1260, %v1251, %v1267
        %v1269 = vsel %vm1262, %v1251, %v1268
        %v1272 = vmul.f32 %v927, %v1263
        %v1273 = vmul.f32 %v997, %v1269
        %1274 = vst [vmem:[%s135] sm:$0xff] %v1272
        %1275 = vst [vmem:[%s135 + $0x8] sm:$0xff] %v1273
        %s1276 = sand.u32 %s52, 1
        %s1277 = scalar_lea.sflag [#allocation4], %s1276
        %s1278 = sand.u32 %s52, 1
        %s1279 = smul.addr %s1278, 16
        %s1280 = scalar_lea.vmem [#allocation5], %s1279
        // Predicated region
        $region29: #{tpu_custom_call.1} parent=23 // pred_check
          %p1281 = pneg %p62
        $region30: #{tpu_custom_call.1} parent=23 // pred_check_branch
          %1283 = sbr.rel (%p1281) target = $region32
        $region31: #{tpu_custom_call.1} parent=23 // pred_region
          %s1284 = smul.u32 2, %s18
          %s1286 = ssub.s32 256, 256
          %1287 = vsyncadd %s1277, %s1286
          %s1288 = smul.addr %s1284, 128
          %s1289 = scalar_lea.hbm %s1, %s1288
          %s1290 = sshll.u32 %s1280, 4
          %s1291 = int_to_ptr.vmem [resolvable:$true] %s1290
          %1296 = dma.vmem_to_hbm [thread:$0]  %s1291, 256, %s1289, %s1277, 128, 128, 8
        $region32: #{tpu_custom_call.1} parent=23 // pred_fallthru
          _
      $region24: #{tpu_custom_call.1} parent=5 // pred_fallthru
        _
      %p1297 = scmp.le.s32.totalorder 2, %s13
      // Predicated region
      $region33: #{tpu_custom_call.1} parent=5 // pred_check
        %p1298 = pneg %p1297
      $region34: #{tpu_custom_call.1} parent=5 // pred_check_branch
        %1300 = sbr.rel (%p1298) target = $region36
      $region35: #{tpu_custom_call.1} parent=5 // pred_region
        %s1301 = ssub.s32 %s13, 2
        // Predicated region
        $region37: #{tpu_custom_call.1} parent=35 // pred_check
          %p1302 = pneg %p68
        $region38: #{tpu_custom_call.1} parent=35 // pred_check_branch
          %1304 = sbr.rel (%p1302) target = $region40
        $region39: #{tpu_custom_call.1} parent=35 // pred_region
          %s1305 = sand.u32 %s53, 1
          %s1306 = scalar_lea.sflag [#allocation4], %s1305
          %s1307 = sand.u32 %s53, 1
          %s1308 = smul.addr %s1307, 16
          %s1309 = scalar_lea.vmem [#allocation5], %s1308
          %1310 = dma.done %s1306, 256
        $region40: #{tpu_custom_call.1} parent=35 // pred_fallthru
          _
      $region36: #{tpu_custom_call.1} parent=5 // pred_fallthru
        _
    $region6: #{tpu_custom_call.1} parent=1 // loop_footer
      %s17 = sadd.s32 1, %s13
    $region7: #{tpu_custom_call.1} parent=1 // loop_footer_branch
      %12 = sbr.rel target = $region3
    $region8: #{tpu_custom_call.1} parent=1 // loop_exit
      _
    %1311 = vsyncpa [#allocation3], 1
    %s1312 = scalar_lea.sflag [#allocation3], 1
    %1313 = vsyncpa %s1312, 1
    %1314 = vsyncpa [#allocation4], 1
    %s1315 = scalar_lea.sflag [#allocation4], 1
    %1316 = vsyncpa %s1315, 1

</llo_original>
